<compile_context>
chip_gen: v5e
topology: v5e:2x2
jax: 0.10.0
libtpu: 0.0.40
codegen_flags: <defaults>
</compile_context>

<pallas_src>
import functools

import jax
import jax.numpy as jnp
from jax import lax
from jax.experimental import pallas as pl
from jax.experimental.pallas import tpu as pltpu

LANE = 128


def _round_up(x, m):
    return ((x + m - 1) // m) * m


def _attention_general_kernel(hv_ref, maps_ref, out_ref, tmax_ref, tsum_ref,
                              *, n_maps, tile_n, masked):
    """One grid step over a (tile_n, H) slab of image maps.

    hv_ref:   (1, H) f32          hidden @ W, computed in the wrapper, resident
    maps_ref: (tile_n, H)         current tile of image maps (pipelined DMA)
    out_ref:  (num_tiles, tile_n) resident f32 output (exp(e - tile_max), then softmax)
    tmax_ref: (num_tiles, 1) f32  per-tile max scratch
    tsum_ref: (num_tiles, 1) f32  per-tile sum-of-exp scratch
    """
    i = pl.program_id(0)

    # Energies for this tile: (1, tile_n).  Contract the H (last) dims of both
    # operands -- the MXU consumes the transposed RHS natively, no XLU transpose.
    hv = hv_ref[...].astype(maps_ref.dtype)
    e = lax.dot_general(
        hv, maps_ref[...],
        dimension_numbers=(((1,), (1,)), ((), ())),
        preferred_element_type=jnp.float32)

    if masked:
        # Mask rows beyond N (zero-padded in the wrapper) to -inf.
        col = i * tile_n + lax.broadcasted_iota(jnp.int32, (1, tile_n), 1)
        e = jnp.where(col < n_maps, e, -jnp.inf)

    # Per-tile softmax statistics, computed while the next DMA streams.
    tmax = jnp.max(e, axis=1, keepdims=True)            # (1, 1)
    p = jnp.exp(e - tmax)                                # padded lanes -> exp(-inf) = 0
    out_ref[pl.ds(i, 1), :] = p
    tmax_ref[pl.ds(i, 1), :] = tmax
    tsum_ref[pl.ds(i, 1), :] = jnp.sum(p, axis=1, keepdims=True)

    # Last step: combine the per-tile stats and rescale in place (one VPU pass).
    @pl.when(i == pl.num_programs(0) - 1)
    def _():
        tm = tmax_ref[...]                               # (num_tiles, 1)
        ts = tsum_ref[...]
        gmax = jnp.max(tm, axis=0, keepdims=True)        # (1, 1) global max
        scale = jnp.exp(tm - gmax)                       # (num_tiles, 1)
        gsum = jnp.sum(ts * scale, axis=0, keepdims=True)
        out_ref[...] = out_ref[...] * (scale / gsum)     # exact normalization


def _default_vmem_limit_bytes():
    """Generation-aware scoped-VMEM limit (v5e/v6e: 128 MiB, v7x: 64 MiB phys)."""
    try:
        cap = pltpu.get_tpu_info().vmem_capacity_bytes
    except Exception:
        cap = 64 * 1024 * 1024          # conservative fallback: v7x per-TC VMEM
    return int(cap * 3 // 4)            # leave headroom for compiler scratch


def _pick_tile_n(n_maps, h, itemsize, vmem_limit_bytes):
    """Largest lane-dense maps tile such that 2x double-buffered tiles plus the
    resident f32 energies fit under the scoped-VMEM budget."""
    out_bytes = 2 * _round_up(n_maps, LANE) * 4          # resident f32 output (x2 safety)
    slack = 2 << 20                                      # hv, stats, compiler internals
    row_bytes = _round_up(h, LANE) * itemsize            # lane-padded VMEM footprint per row
    avail = max(vmem_limit_bytes - out_bytes - slack, 4 << 20)
    per_buf = min(avail // 2, 32 << 20)                  # two buffers for the streamed tiles
    tile_n = per_buf // row_bytes
    if tile_n >= n_maps:
        return int(n_maps)                               # single block == full array dims
    return int(max(LANE, (tile_n // LANE) * LANE))


def attention_general(hidden, image_maps, weight, bias=None, *,
                      tile_n=None, vmem_limit_bytes=None):
    """Forward pass of Attention(method='general').

    hidden: (H,)   image_maps: (N, H)   weight: (H, H) PyTorch Linear weight (out, in)
    bias:   ignored -- it shifts every energy by the same constant and softmax is
            shift-invariant, so the returned weights are unchanged.
    Returns: (1, 1, N) float32 softmax attention weights (matches the PyTorch module).
    """
    del bias  # softmax-invariant constant shift (see docstring)
    n_maps, hidden_size = image_maps.shape

    if vmem_limit_bytes is None:
        vmem_limit_bytes = _default_vmem_limit_bytes()
    itemsize = jnp.dtype(image_maps.dtype).itemsize
    if tile_n is None:
        tile_n = _pick_tile_n(n_maps, hidden_size, itemsize, vmem_limit_bytes)
    tile_n = int(min(tile_n, n_maps))
    if tile_n != n_maps:
        assert tile_n % 8 == 0, f"tile_n={tile_n} must be a multiple of 8 (or equal N)"

    n_pad = _round_up(n_maps, tile_n)
    num_tiles = n_pad // tile_n
    masked = n_pad != n_maps

    # hv = hidden @ W  (identity: hidden . (maps_i @ W^T) == (hidden @ W) . maps_i).
    # Tiny HxH dot done once in XLA so neither W nor a scratch lives in VMEM.
    hv = jnp.dot(hidden.reshape(1, hidden_size), weight,
                 preferred_element_type=jnp.float32,
                 precision="highest")                    # (1, H) f32

    maps = image_maps
    if masked:
        maps = jnp.pad(maps, ((0, n_pad - n_maps), (0, 0)))

    kernel = functools.partial(_attention_general_kernel,
                               n_maps=n_maps, tile_n=tile_n, masked=masked)

    out = pl.pallas_call(
        kernel,
        out_shape=jax.ShapeDtypeStruct((num_tiles, tile_n), jnp.float32),
        grid=(num_tiles,),
        in_specs=[
            pl.BlockSpec((1, hidden_size), lambda i: (0, 0)),        # hv   (resident)
            pl.BlockSpec((tile_n, hidden_size), lambda i: (i, 0)),   # maps (pipelined)
        ],
        out_specs=pl.BlockSpec((num_tiles, tile_n), lambda i: (0, 0)),  # resident output
        scratch_shapes=[pltpu.VMEM((num_tiles, 1), jnp.float32),     # per-tile max
                        pltpu.VMEM((num_tiles, 1), jnp.float32)],    # per-tile sum-exp
        compiler_params=pltpu.CompilerParams(
            dimension_semantics=("arbitrary",),   # all steps write the same output block
            vmem_limit_bytes=int(vmem_limit_bytes)),
    )(hv, maps)

    # (num_tiles, tile_n) row-major matches map ordering; drop padded tail.
    return out.reshape(-1)[:n_maps].reshape(1, 1, n_maps)


if __name__ == "__main__":
    key = jax.random.PRNGKey(0)

    # ---- Test 1: module-sized toy shapes (H=32, N=8), f32, single-block path ----
    hidden_size, n_maps = 32, 8
    k_h, k_m, k_w, k_b, k_rest = jax.random.split(key, 5)
    bound = 1.0 / jnp.sqrt(jnp.float32(hidden_size))
    weight = jax.random.uniform(k_w, (hidden_size, hidden_size), jnp.float32, -bound, bound)
    bias = jax.random.uniform(k_b, (hidden_size,), jnp.float32, -bound, bound)
    hidden = jax.random.normal(k_h, (hidden_size,), jnp.float32)
    image_maps = jax.random.normal(k_m, (n_maps, hidden_size), jnp.float32)

    out = jax.block_until_ready(attention_general(hidden, image_maps, weight, bias))
    ref_e = jnp.einsum("h,nh->n", hidden,
                       jnp.dot(image_maps, weight.T, precision="highest") + bias,
                       precision="highest")
    ref = jax.nn.softmax(ref_e).reshape(1, 1, n_maps)
    assert out.shape == (1, 1, n_maps)
    assert jnp.allclose(out, ref, atol=1e-3, rtol=1e-3), float(jnp.max(jnp.abs(out - ref)))

    # ---- Test 2: tiled + padded path (N=300 not divisible by tile_n=128), f32 ----
    hidden_size2, n_maps2, tile2 = 128, 300, 128
    k_h2, k_m2, k_w2 = jax.random.split(k_rest, 3)
    weight2 = jax.random.normal(k_w2, (hidden_size2, hidden_size2), jnp.float32) * 0.01
    hidden2 = jax.random.normal(k_h2, (hidden_size2,), jnp.float32)
    maps2 = jax.random.normal(k_m2, (n_maps2, hidden_size2), jnp.float32)

    out2 = jax.block_until_ready(
        attention_general(hidden2, maps2, weight2, None, tile_n=tile2))
    hv2 = jnp.dot(hidden2.reshape(1, -1), weight2,
                  preferred_element_type=jnp.float32, precision="highest")
    ref_e2 = jnp.dot(maps2, hv2.reshape(-1), precision="highest")
    ref2 = jax.nn.softmax(ref_e2).reshape(1, 1, n_maps2)
    assert out2.shape == (1, 1, n_maps2)
    assert jnp.allclose(out2, ref2, atol=2e-3, rtol=2e-2), float(jnp.max(jnp.abs(out2 - ref2)))
    assert jnp.allclose(jnp.sum(out2), 1.0, atol=1e-3)

    # ---- Test 3: maps already stored in bf16 (streamed without wrapper re-cast) ----
    hidden_size3, n_maps3 = 128, 256
    k_h3, k_m3, k_w3 = jax.random.split(jax.random.PRNGKey(1), 3)
    weight3 = jax.random.normal(k_w3, (hidden_size3, hidden_size3), jnp.float32) * 0.02
    hidden3 = jax.random.normal(k_h3, (hidden_size3,), jnp.float32)
    maps3 = (jax.random.normal(k_m3, (n_maps3, hidden_size3), jnp.float32)
             .astype(jnp.bfloat16))

    out3 = jax.block_until_ready(attention_general(hidden3, maps3, weight3, None))
    hv3 = jnp.dot(hidden3.reshape(1, -1), weight3,
                  preferred_element_type=jnp.float32, precision="highest")
    ref_e3 = jnp.dot(maps3, hv3.reshape(-1).astype(jnp.bfloat16),
                     preferred_element_type=jnp.float32)
    ref3 = jax.nn.softmax(ref_e3).reshape(1, 1, n_maps3)
    assert out3.shape == (1, 1, n_maps3)
    assert jnp.allclose(out3, ref3, atol=5e-3, rtol=5e-2), float(jnp.max(jnp.abs(out3 - ref3)))

    print("KERNEL_OK")
</pallas_src>

<mosaic_0001>
module attributes {stable_mosaic.version = 11 : i64} {
  func.func @_attention_general_kernel(%arg0: i32, %arg1: memref<1x32xf32, #tpu.memory_space<vmem>>, %arg2: memref<8x32xf32, #tpu.memory_space<vmem>>, %arg3: memref<1x8xf32, #tpu.memory_space<vmem>>, %arg4: memref<1x1xf32, #tpu.memory_space<vmem>>, %arg5: memref<1x1xf32, #tpu.memory_space<vmem>>) attributes {dimension_semantics = [#tpu.dimension_semantics<arbitrary>], iteration_bounds = array<i64: 1>, scalar_prefetch = 0 : i64, scratch_operands = 2 : i64, tpu.core_type = #tpu.core_type<tc>, window_params = [{pipeline_mode = #tpu.pipeline_mode<synchronous>, transform_indices = @transform_0, window_bounds = array<i64: 1, 32>}, {transform_indices = @transform_1, window_bounds = array<i64: 8, 32>}, {pipeline_mode = #tpu.pipeline_mode<synchronous>, transform_indices = @transform_2, window_bounds = array<i64: 1, 8>}]} {
    %c0 = arith.constant 0 : index
    %c0_0 = arith.constant 0 : index
    %0 = vector.load %arg1[%c0, %c0_0] : memref<1x32xf32, #tpu.memory_space<vmem>>, vector<1x32xf32>
    %c0_1 = arith.constant 0 : index
    %c0_2 = arith.constant 0 : index
    %1 = vector.load %arg2[%c0_1, %c0_2] : memref<8x32xf32, #tpu.memory_space<vmem>>, vector<8x32xf32>
    %cst = arith.constant dense<0.000000e+00> : vector<1x8xf32>
    %2 = tpu.matmul %0, %1, %cst {dimension_numbers = #tpu.dot_dimension_numbers<[1], [1], [0], [0], [0, 0, 1, 0], [], []>} : vector<1x32xf32>, vector<8x32xf32>, vector<1x8xf32> -> vector<1x8xf32>
    %cst_3 = arith.constant dense<0xFF800000> : vector<1xf32>
    %3 = vector.multi_reduction <maximumf>, %2, %cst_3 [1] : vector<1x8xf32> to vector<1xf32>
    %4 = vector.shape_cast %3 : vector<1xf32> to vector<1x1xf32>
    %5 = vector.broadcast %4 : vector<1x1xf32> to vector<1x8xf32>
    %6 = arith.subf %2, %5 : vector<1x8xf32>
    %7 = math.exp %6 : vector<1x8xf32>
    %8 = arith.index_cast %arg0 : i32 to index
    %c0_4 = arith.constant 0 : index
    %9 = vector.load %arg3[%8, %c0_4] : memref<1x8xf32, #tpu.memory_space<vmem>>, vector<1x8xf32>
    tpu.vector_store %arg3[%8, %c0_4], %7 {strides = array<i32>} : memref<1x8xf32, #tpu.memory_space<vmem>>, vector<1x8xf32>,
    %10 = arith.index_cast %arg0 : i32 to index
    %c0_5 = arith.constant 0 : index
    %11 = vector.load %arg4[%10, %c0_5] : memref<1x1xf32, #tpu.memory_space<vmem>>, vector<1x1xf32>
    tpu.vector_store %arg4[%10, %c0_5], %4 {strides = array<i32>} : memref<1x1xf32, #tpu.memory_space<vmem>>, vector<1x1xf32>,
    %cst_6 = arith.constant dense<0.000000e+00> : vector<1xf32>
    %12 = vector.multi_reduction <add>, %7, %cst_6 [1] : vector<1x8xf32> to vector<1xf32>
    %13 = vector.shape_cast %12 : vector<1xf32> to vector<1x1xf32>
    %14 = arith.index_cast %arg0 : i32 to index
    %c0_7 = arith.constant 0 : index
    %15 = vector.load %arg5[%14, %c0_7] : memref<1x1xf32, #tpu.memory_space<vmem>>, vector<1x1xf32>
    tpu.vector_store %arg5[%14, %c0_7], %13 {strides = array<i32>} : memref<1x1xf32, #tpu.memory_space<vmem>>, vector<1x1xf32>,
    %c0_i32 = arith.constant 0 : i32
    %16 = arith.cmpi eq, %arg0, %c0_i32 : i32
    %17 = arith.extui %16 : i1 to i32
    %c0_i32_8 = arith.constant 0 : i32
    %18 = arith.cmpi ne, %17, %c0_i32_8 : i32
    scf.if %18 {
      %c0_9 = arith.constant 0 : index
      %c0_10 = arith.constant 0 : index
      %19 = vector.load %arg4[%c0_9, %c0_10] : memref<1x1xf32, #tpu.memory_space<vmem>>, vector<1x1xf32>
      %c0_11 = arith.constant 0 : index
      %c0_12 = arith.constant 0 : index
      %20 = vector.load %arg5[%c0_11, %c0_12] : memref<1x1xf32, #tpu.memory_space<vmem>>, vector<1x1xf32>
      %cst_13 = arith.constant dense<0xFF800000> : vector<1xf32>
      %21 = vector.multi_reduction <maximumf>, %19, %cst_13 [0] : vector<1x1xf32> to vector<1xf32>
      %22 = vector.shape_cast %21 : vector<1xf32> to vector<1x1xf32>
      %23 = arith.subf %19, %22 : vector<1x1xf32>
      %24 = math.exp %23 : vector<1x1xf32>
      %25 = arith.mulf %20, %24 : vector<1x1xf32>
      %cst_14 = arith.constant dense<0.000000e+00> : vector<1xf32>
      %26 = vector.multi_reduction <add>, %25, %cst_14 [0] : vector<1x1xf32> to vector<1xf32>
      %27 = vector.shape_cast %26 : vector<1xf32> to vector<1x1xf32>
      %c0_15 = arith.constant 0 : index
      %c0_16 = arith.constant 0 : index
      %28 = vector.load %arg3[%c0_15, %c0_16] : memref<1x8xf32, #tpu.memory_space<vmem>>, vector<1x8xf32>
      %29 = arith.divf %24, %27 : vector<1x1xf32>
      %30 = vector.broadcast %29 : vector<1x1xf32> to vector<1x8xf32>
      %31 = arith.mulf %28, %30 : vector<1x8xf32>
      %c0_17 = arith.constant 0 : index
      %c0_18 = arith.constant 0 : index
      %32 = vector.load %arg3[%c0_17, %c0_18] : memref<1x8xf32, #tpu.memory_space<vmem>>, vector<1x8xf32>
      tpu.vector_store %arg3[%c0_17, %c0_18], %31 {strides = array<i32>} : memref<1x8xf32, #tpu.memory_space<vmem>>, vector<1x8xf32>,
    } else {
    }
    return
  }
  func.func @transform_0(%arg0: i32) -> (i32, i32) {
    %c0_i32 = arith.constant 0 : i32
    %c0_i32_0 = arith.constant 0 : i32
    %c0_i32_1 = arith.constant 0 : i32
    return %c0_i32, %c0_i32_0 : i32, i32
  }
  func.func @transform_1(%arg0: i32) -> (i32, i32) {
    %c0_i32 = arith.constant 0 : i32
    %c0_i32_0 = arith.constant 0 : i32
    return %arg0, %c0_i32 : i32, i32
  }
  func.func @transform_2(%arg0: i32) -> (i32, i32) {
    %c0_i32 = arith.constant 0 : i32
    %c0_i32_0 = arith.constant 0 : i32
    %c0_i32_1 = arith.constant 0 : i32
    return %c0_i32, %c0_i32_0 : i32, i32
  }
}

</mosaic_0001>

<llo_original>
// kernel: tpu_custom_call.1
$region0: #{tpu_custom_call.1}
  #allocation0 [shape = 'u32[]', space=smem, size = 0x4, offset = 0x4, fixed_abs, tag = 'smem constant byte address 0x4 - core index']
  #allocation1 [shape = 'u32[72,128]{1,0:T(1,128)}', space=vmem, size = 0x9000, scoped, tag = 'internal scratch']
  #allocation2 [shape = 'f32[1,1]{1,0:T(1,128)}', space=vmem, size = 0x200, scoped, tag = 'scratch operand']
  #allocation3 [shape = 'f32[1,1]{1,0:T(1,128)}', space=vmem, size = 0x200, scoped, tag = 'scratch operand']
  %s0 = inlined_call_operand.hbm [shape: f32[1,32], index: 0, kind: input, shape index: {}]
  %s1 = inlined_call_operand.hbm [shape: f32[8,32], index: 1, kind: input, shape index: {}]
  %s2 = inlined_call_operand.hbm [shape: f32[1,8], index: 2, kind: output, shape index: {}]
  %s3 = sld [smem:[#allocation0]]
  $region30: #{tpu_custom_call.1} parent=0
    _
  %s5 = ssub.s32 1, %s3
  %s6 = scalar_select 0, %s5, %s3
  $region1: #{tpu_custom_call.1} parent=0
    #allocation4 [shape = 'u8[512]{0}', space=vmem, size = 0x400, scoped, tag = 'input window, operand 0, single buffered']
    #allocation5 [shape = 's32[1]{0}', space=sflag, size = 0x4, scoped, tag = 'scoped memory for tpu_custom_call.1']
    #allocation6 [shape = 's32[1]{0}', space=sflag, size = 0x4, scoped, tag = 'scoped memory for tpu_custom_call.1']
    #allocation7 [shape = 'u8[4096]{0}', space=vmem, size = 0x1000, scoped, tag = 'input window, operand 1, single buffered']
    #allocation8 [shape = 's32[1]{0}', space=sflag, size = 0x4, scoped, tag = 'scoped memory for tpu_custom_call.1']
    #allocation9 [shape = 'u8[512]{0}', space=vmem, size = 0x400, scoped, tag = 'output window, operand 0, single buffered']
    %7 = vsyncpa [#allocation5], 0
    %8 = vsyncpa [#allocation8], 0
    %9 = vsyncpa [#allocation6], 0
    // Predicated region
    $region2: #{tpu_custom_call.1} parent=1 // pred_check
      _
    $region3: #{tpu_custom_call.1} parent=1 // pred_check_branch
      %11 = sbr.rel (0) target = $region5
    $region4: #{tpu_custom_call.1} parent=1 // pred_region
      %13 = vsyncadd [#allocation5], 0
      %s15 = sshll.u32 %s0, 4
      %s16 = int_to_ptr.hbm [resolvable:$true] %s15
      %s17 = sshll.u32 [#allocation4], 4
      %s18 = int_to_ptr.vmem [resolvable:$true] %s17
      %20 = dma.hbm_to_vmem [thread:$0]  %s16, 16, %s18, [#allocation5]
    $region5: #{tpu_custom_call.1} parent=1 // pred_fallthru
      _
    // Predicated region
    $region6: #{tpu_custom_call.1} parent=1 // pred_check
      _
    $region7: #{tpu_custom_call.1} parent=1 // pred_check_branch
      %22 = sbr.rel (0) target = $region9
    $region8: #{tpu_custom_call.1} parent=1 // pred_region
      %24 = vsyncadd [#allocation8], 0
      %s26 = sshll.u32 %s1, 4
      %s27 = int_to_ptr.hbm [resolvable:$true] %s26
      %s28 = sshll.u32 [#allocation7], 4
      %s29 = int_to_ptr.vmem [resolvable:$true] %s28
      %31 = dma.hbm_to_vmem [thread:$0]  %s27, 128, %s29, [#allocation8]
    $region9: #{tpu_custom_call.1} parent=1 // pred_fallthru
      _
    // Predicated region
    $region10: #{tpu_custom_call.1} parent=1 // pred_check
      _
    $region11: #{tpu_custom_call.1} parent=1 // pred_check_branch
      %33 = sbr.rel (0) target = $region13
    $region12: #{tpu_custom_call.1} parent=1 // pred_region
      %35 = dma.done [#allocation5], 16
    $region13: #{tpu_custom_call.1} parent=1 // pred_fallthru
      _
    // Predicated region
    $region14: #{tpu_custom_call.1} parent=1 // pred_check
      _
    $region15: #{tpu_custom_call.1} parent=1 // pred_check_branch
      %37 = sbr.rel (0) target = $region17
    $region16: #{tpu_custom_call.1} parent=1 // pred_region
      %39 = dma.done [#allocation8], 128
    $region17: #{tpu_custom_call.1} parent=1 // pred_fallthru
      _
    %v40 = vld [vmem:[#allocation4] sm:$0x1]
    %v41 = vld [vmem:[#allocation7] sm:$0xff]
    %vm42 = vcmask 261120
    %v44 = vsel %vm42, %v40, 0
    %v47 = vsel %vm42, %v41, 0
    %49 = vmatpush.xpose.msra.mxu0 0.0
    %50 = vmatpush.xpose.msra.mxu0 0.0
    %51 = vmatpush.xpose.msra.mxu0 0.0
    %52 = vmatpush.xpose.msra.mxu0 0.0
    %53 = vmatpush.xpose.msra.mxu0 0.0
    %54 = vmatpush.xpose.msra.mxu0 0.0
    %55 = vmatpush.xpose.msra.mxu0 0.0
    %56 = vmatpush.xpose.msra.mxu0 0.0
    %57 = vmatpush.xpose.msra.mxu0 0.0
    %58 = vmatpush.xpose.msra.mxu0 0.0
    %59 = vmatpush.xpose.msra.mxu0 0.0
    %60 = vmatpush.xpose.msra.mxu0 0.0
    %61 = vmatpush.xpose.msra.mxu0 0.0
    %62 = vmatpush.xpose.msra.mxu0 0.0
    %63 = vmatpush.xpose.msra.mxu0 0.0
    %64 = vmatpush.xpose.msra.mxu0 %v47
    %65 = vmatmul.f32.gmra.mxu0 %v44
    %v66 = vpop.f32.mrf.mxu0
    %v67 = vadd.f32 0.0, %v66
    %68 = vdwg.mxu0
    %vm69 = vcmask 57344
    %v70 = vsel %vm69, %v67, -inf
    %71 = vmax.xlane.f32.xlu0 %v70
    %v72 = vpop.xlane.xlu0 %71
    %v73 = vsub.f32 %v67, %v72
    %v74 = vmul.f32 %v73, 1.442695
    %v75 = vpow.pop %v74
    %76 = vst.msk [vmem:[#allocation9] sm:$0x1] %vm69, %v75
    %vm77 = vcmask 0
    %78 = vst.msk [vmem:[#allocation2] sm:$0x1] %vm77, %v72
    %v79 = vsel %vm69, %v75, 0.0
    %80 = vadd.xlane.f32.xlu0 %v79
    %v81 = vpop.xlane.xlu0 %80
    %82 = vst.msk [vmem:[#allocation3] sm:$0x1] %vm77, %v81
    %p83 = scmp.eq.s32.totalorder 0, 0
    // Predicated region
    $region18: #{tpu_custom_call.1} parent=1 // pred_check
      %p84 = pneg %p83
    $region19: #{tpu_custom_call.1} parent=1 // pred_check_branch
      %86 = sbr.rel (%p84) target = $region21
    $region20: #{tpu_custom_call.1} parent=1 // pred_region
      %v87 = vld [vmem:[#allocation2] sm:$0x1]
      %v88 = vld [vmem:[#allocation3] sm:$0x1]
      %v89 = vsub.f32 %v87, %v87
      %v90 = vmul.f32 %v89, 1.442695
      %v91 = vpow.pop %v90
      %v92 = vmul.f32 %v88, %v91
      %v93 = vadd.f32 %v92, 0.0
      %v94 = vld [vmem:[#allocation9] sm:$0x1]
      %v95 = vrcp.pop %v93
      %v96 = vmul.f32 %v93, %v95
      %v97 = vsub.f32 1.0, %v96
      %v98 = vmul.f32 %v95, %v97
      %v99 = vadd.f32 %v95, %v98
      %vm100 = vweird.f32 %v93
      %vm101 = vweird.f32 %v95
      %vm102 = vmor %vm100, %vm101
      %v103 = vsel %vm102, %v95, %v99
      %v104 = vand.u32 2147483647, %v93
      %vm105 = vcmp.eq.f32.partialorder %v104, 8.507059e+37
      %v106 = vand.u32 %v93, 2147483648
      %v107 = vor.u32 1.1754944e-38, %v106
      %v108 = vsel %vm105, %v107, %v103
      %v109 = vmul.f32 %v91, %v108
      %111 = vset.pattern.permute.xlu0 0
      %112 = vperm.xlu0 %111, %v109
      %v113 = vpop.permute.xlu0 %112
      %v115 = vperm.slane %v113, 0
      %v116 = vmul.f32 %v94, %v115
      %117 = vst.msk [vmem:[#allocation9] sm:$0x1] %vm69, %v116
    $region21: #{tpu_custom_call.1} parent=1 // pred_fallthru
      _
    // Predicated region
    $region22: #{tpu_custom_call.1} parent=1 // pred_check
      _
    $region23: #{tpu_custom_call.1} parent=1 // pred_check_branch
      %119 = sbr.rel (0) target = $region25
    $region24: #{tpu_custom_call.1} parent=1 // pred_region
      %121 = vsyncadd [#allocation6], 0
      %s123 = sshll.u32 [#allocation9], 4
      %s124 = int_to_ptr.vmem [resolvable:$true] %s123
      %s125 = sshll.u32 %s2, 4
      %s126 = int_to_ptr.hbm [resolvable:$true] %s125
      %128 = dma.vmem_to_hbm [thread:$0]  %s124, 16, %s126, [#allocation6]
    $region25: #{tpu_custom_call.1} parent=1 // pred_fallthru
      _
    // Predicated region
    $region26: #{tpu_custom_call.1} parent=1 // pred_check
      _
    $region27: #{tpu_custom_call.1} parent=1 // pred_check_branch
      %130 = sbr.rel (0) target = $region29
    $region28: #{tpu_custom_call.1} parent=1 // pred_region
      %132 = dma.done [#allocation6], 16
    $region29: #{tpu_custom_call.1} parent=1 // pred_fallthru
      _
    %133 = vsyncpa [#allocation5], 1
    %134 = vsyncpa [#allocation8], 1
    %135 = vsyncpa [#allocation6], 1

</llo_original>
